<compile_context>
chip_gen: v7x
topology: tpu7x:2x2x1
jax: 0.10.0
libtpu: 0.0.40
codegen_flags: <defaults>
</compile_context>

<pallas_src>
import jax
import jax.numpy as jnp
from jax import lax
from jax.experimental import pallas as pl
from jax.experimental.pallas import tpu as pltpu


LANE = 128
STRIP_ROWS = 16                       # sublane rows per inner strip (2 f32 vregs/channel)
QUANTUM = STRIP_ROWS * LANE           # 2048 points: tile / padding granularity


def _round_up(x, m):
    return ((x + m - 1) // m) * m


def _cdiv(a, b):
    return (a + b - 1) // b


def _build_kernel(*, type_l, multi_head, self_su, start_part, n_parts,
                  n_true, tile_rows, conf_eps=None):
    """Specialize a kernel for a static loss configuration.

    Ref layout (point axis packed as (rows, 128) minor dims):
      nocs_ref  (1, 3*P, tile_rows, 128)
      gt_ref    (1, 3,   tile_rows, 128)
      conf_ref  (1, 1,   tile_rows, 128)   iff self_su
      mask_ref  (1, P,   tile_rows, 128)   iff multi_head
      out_ref   (1, 1, 1, 1)               per (split, batch) loss, revisited over N tiles
      acc_ref   (STRIP_ROWS, 128) f32      VMEM accumulator across strips / N tiles
    """
    part_range = list(range(start_part, n_parts)) if multi_head else [0]
    num_terms = len(part_range)
    inv_n = 1.0 / float(n_true)
    num_strips = tile_rows // STRIP_ROWS

    def kernel(*refs):
        it = iter(refs)
        nocs_ref = next(it)
        gt_ref = next(it)
        conf_ref = next(it) if self_su else None
        mask_ref = next(it) if multi_head else None
        out_ref = next(it)
        acc_ref = next(it)

        n_idx = pl.program_id(2)

        @pl.when(n_idx == 0)
        def _init():
            acc_ref[...] = jnp.zeros_like(acc_ref)

        def strip(r0):
            rows = pl.ds(r0, STRIP_ROWS)
            # Per-strip working set only: 3 gt slabs, conf, log_conf, running
            # sum plus transient per-part temps (~20-30 vregs) -> no spills.
            gt = [gt_ref[0, c, rows, :].astype(jnp.float32) for c in range(3)]
            if self_su and num_terms > 0:
                conf = conf_ref[0, 0, rows, :].astype(jnp.float32)
                if conf_eps is not None:
                    conf = jnp.maximum(conf, jnp.float32(conf_eps))
                log_conf = jnp.log(conf)                      # EUP slot
            ssum = jnp.zeros((STRIP_ROWS, LANE), jnp.float32)
            for i in part_range:
                acc3 = None
                for c in range(3):
                    dc = (nocs_ref[0, 3 * i + c, rows, :].astype(jnp.float32)
                          - gt[c])
                    t = dc * dc if type_l == 'L2' else jnp.abs(dc)
                    acc3 = t if acc3 is None else acc3 + t
                diff = jnp.sqrt(acc3) if type_l == 'L2' else acc3   # sqrt -> EUP
                term = diff
                if multi_head:
                    term = mask_ref[0, i, rows, :].astype(jnp.float32) * term
                if self_su:
                    term = term * conf
                ssum = ssum + term
            if self_su and num_terms > 0:
                # Reference adds -0.1*mean(log conf) once per part iteration;
                # fold into a single scaled add (factor 1 for single-head).
                ssum = ssum + (-0.1 * float(num_terms)) * log_conf
            acc_ref[...] = acc_ref[...] + ssum

        if num_strips <= 4:
            for si in range(num_strips):         # static slices, fully unrolled
                strip(si * STRIP_ROWS)
        else:
            def body(si, carry):
                strip(pl.multiple_of(si * STRIP_ROWS, STRIP_ROWS))
                return carry
            lax.fori_loop(0, num_strips, body, 0)

        @pl.when(n_idx == pl.num_programs(2) - 1)
        def _finish():
            # One cross-lane + cross-sublane reduction and one tiny store
            # per (split, batch) element.
            t = jnp.sum(acc_ref[...], axis=1, keepdims=True)     # (16, 1)
            t = jnp.sum(t, axis=0, keepdims=True)                # (1, 1)
            out_ref[...] = (t * inv_n).reshape(1, 1, 1, 1)

    return kernel


def arti_nocs_loss(nocs, nocs_gt, confidence=None, mask_array=None, *,
                   type_l='L2', multi_head=False, self_su=False,
                   contain_bg=True, channel_first=False,
                   tile_points=None, vmem_budget_bytes=None, conf_eps=None):
    """Pallas-backed equivalent of Arti_NOCS_Loss.forward. Returns (B,) f32.

    Input layout:
      channel_first=False (PyTorch layout):
        nocs (B, N, 3P), nocs_gt (B, N, 3), confidence (B, N, 1), mask (B, N, P)
      channel_first=True (producer already channel-first, no wrapper transpose):
        nocs (B, 3P, N), nocs_gt (B, 3, N), confidence (B, 1, N), mask (B, P, N)
    Inputs may be f32 or bf16; accumulation is always f32 in-kernel.
    """
    if channel_first:
        B, C, N = nocs.shape
    else:
        B, N, C = nocs.shape
    n_parts = C // 3
    start_part = 1 if contain_bg else 0
    if multi_head and mask_array is None:
        raise ValueError("multi_head=True requires mask_array")
    if self_su and confidence is None:
        raise ValueError("self_su=True requires confidence")

    # TODO(synk): when channel_first=False, the (B,N,C)->(B,C,N) transpose is a
    # wrapper-side HBM copy; emit channel-first activations in the producer to
    # remove it (channel_first=True path below is copy-free).
    def _to_cf(x):
        return x if channel_first else jnp.transpose(x, (0, 2, 1))

    # (array, pad value).  Pad values give exactly-zero contribution:
    # nocs/gt -> diff 0, mask -> 0, conf -> 1 (log 1 = 0).
    arrays = [(_to_cf(nocs), 0.0), (_to_cf(nocs_gt), 0.0)]
    if self_su:
        arrays.append((_to_cf(confidence), 1.0))
    if multi_head:
        arrays.append((_to_cf(mask_array), 0.0))

    bytes_per_point = sum(int(a.shape[1]) * a.dtype.itemsize for a, _ in arrays)

    # ---- generation-aware tile selection -------------------------------
    try:
        vmem_cap = int(pltpu.get_tpu_info().vmem_capacity_bytes)
    except Exception:
        vmem_cap = 64 * 1024 * 1024       # conservative (v7x per-core VMEM)
    if vmem_budget_bytes is None:
        vmem_budget_bytes = min(24 << 20, vmem_cap // 3)

    if tile_points is not None:
        tile_max = max(QUANTUM, _round_up(int(tile_points), QUANTUM))
    else:
        tile_max = max(QUANTUM,
                       (vmem_budget_bytes // (2 * bytes_per_point))
                       // QUANTUM * QUANTUM)

    n_tiles = _cdiv(N, tile_max)
    n_split = 1
    # v7x megacore: for B == 1 split the reduction axis across the two cores.
    if B == 1 and _round_up(N, QUANTUM) >= 2 * QUANTUM:
        if n_tiles < 2:
            n_tiles = 2
        elif n_tiles % 2:
            n_tiles += 1
        n_split = 2
    tile_pts = _round_up(_cdiv(N, n_tiles), QUANTUM)
    n_pad = n_tiles * tile_pts
    tile_rows = tile_pts // LANE
    rows_pad = n_pad // LANE
    tiles_per_split = n_tiles // n_split

    def _prep(x, pad_value):
        if x.shape[2] != N:
            raise ValueError("inconsistent point counts across inputs")
        if N < n_pad:
            x = jnp.pad(x, ((0, 0), (0, 0), (0, n_pad - N)),
                        constant_values=pad_value)
        # Free metadata reshape: split the minor point axis into (rows, 128).
        return x.reshape(x.shape[0], x.shape[1], rows_pad, LANE)

    inputs = [_prep(a, pv) for a, pv in arrays]

    def _in_map(s, b, n):
        return (b, 0, s * tiles_per_split + n, 0)

    in_specs = [
        pl.BlockSpec((1, int(a.shape[1]), tile_rows, LANE), _in_map)
        for a in inputs
    ]

    kernel = _build_kernel(
        type_l=type_l, multi_head=multi_head, self_su=self_su,
        start_part=start_part, n_parts=n_parts, n_true=N,
        tile_rows=tile_rows, conf_eps=conf_eps)

    footprint = 2 * bytes_per_point * tile_pts + 4 * STRIP_ROWS * LANE + 4096
    vmem_limit = int(max(32 << 20,
                         min(vmem_cap * 3 // 4, 2 * footprint + (8 << 20))))

    grid = (n_split, B, tiles_per_split)
    out = pl.pallas_call(
        kernel,
        out_shape=jax.ShapeDtypeStruct((n_split, B, 1, 1), jnp.float32),
        grid_spec=pltpu.PrefetchScalarGridSpec(
            num_scalar_prefetch=0,
            grid=grid,
            in_specs=in_specs,
            out_specs=pl.BlockSpec((1, 1, 1, 1), lambda s, b, n: (s, b, 0, 0)),
            scratch_shapes=[pltpu.VMEM((STRIP_ROWS, LANE), jnp.float32)],
        ),
        compiler_params=pltpu.CompilerParams(
            dimension_semantics=("parallel", "parallel", "arbitrary"),
            vmem_limit_bytes=vmem_limit),
    )(*inputs)

    # Sum the per-core partial sums (n_split is 1 except for the B==1 split).
    return jnp.sum(out[:, :, 0, 0], axis=0)


def _reference_loss(nocs, nocs_gt, confidence=None, mask_array=None, *,
                    type_l='L2', multi_head=False, self_su=False,
                    contain_bg=True):
    """Pure-jnp transcription of the PyTorch forward, for verification."""
    start_part = 1 if contain_bg else 0
    n_parts = nocs.shape[2] // 3
    conf = confidence[:, :, 0] if confidence is not None else None
    if multi_head:
        loss = jnp.zeros((nocs.shape[0],), jnp.float32)
        for i in range(start_part, n_parts):
            d = nocs[:, :, 3 * i:3 * (i + 1)] - nocs_gt
            diff_l2 = jnp.linalg.norm(d, axis=2)
            diff_abs = jnp.sum(jnp.abs(d), axis=2)
            m = mask_array[:, :, i]
            diff = diff_l2 if type_l == 'L2' else diff_abs
            if not self_su:
                loss = loss + jnp.mean(m * diff, axis=1)
            else:
                loss = loss + jnp.mean(m * diff * conf, axis=1)
            if self_su:
                loss = loss + (-0.1) * jnp.mean(jnp.log(conf), axis=1)
        return loss
    d = nocs - nocs_gt
    diff_l2 = jnp.linalg.norm(d, axis=2)
    diff_abs = jnp.sum(jnp.abs(d), axis=2)
    if not self_su:
        return jnp.mean(diff_l2 if type_l == 'L2' else diff_abs, axis=1)
    if type_l == 'L2':
        return jnp.mean(diff_l2 * conf - 0.1 * jnp.log(conf), axis=1)
    return jnp.mean(conf * diff_abs - 0.1 * jnp.log(conf), axis=1)


if __name__ == "__main__":
    key = jax.random.PRNGKey(0)
    B, N, P = 2, 1000, 4            # batch, points, parts (channels = 3*P = 12)

    k1, k2, k3, k4 = jax.random.split(key, 4)
    nocs = jax.random.uniform(k1, (B, N, 3 * P), dtype=jnp.float32)
    nocs_gt = jax.random.uniform(k2, (B, N, 3), dtype=jnp.float32)
    confidence = jax.random.uniform(k3, (B, N, 1), dtype=jnp.float32,
                                    minval=0.1, maxval=1.0)
    part_ids = jax.random.randint(k4, (B, N), 0, P)
    mask_array = jax.nn.one_hot(part_ids, P, dtype=jnp.float32)   # (B, N, P)

    def check(out, ref, tol=1e-4):
        out = jax.block_until_ready(out)
        assert out.shape == ref.shape, (out.shape, ref.shape)
        assert jnp.allclose(out, ref, atol=tol, rtol=tol), (out, ref)

    # 1) Richest config: multi-head, self-supervised, L2 (single tile / strip).
    cfg = dict(type_l='L2', multi_head=True, self_su=True, contain_bg=True)
    check(arti_nocs_loss(nocs, nocs_gt, confidence, mask_array, **cfg),
          _reference_loss(nocs, nocs_gt, confidence, mask_array, **cfg))

    # 1b) Same config via the copy-free channel-first producer layout.
    check(arti_nocs_loss(jnp.transpose(nocs, (0, 2, 1)),
                         jnp.transpose(nocs_gt, (0, 2, 1)),
                         jnp.transpose(confidence, (0, 2, 1)),
                         jnp.transpose(mask_array, (0, 2, 1)),
                         channel_first=True, **cfg),
          _reference_loss(nocs, nocs_gt, confidence, mask_array, **cfg))

    # 2) Larger N: forced small tile -> multi-tile accumulation path.
    N2 = 9000
    j1, j2, j3, j4 = jax.random.split(jax.random.PRNGKey(1), 4)
    nocs2 = jax.random.uniform(j1, (B, N2, 3 * P), dtype=jnp.float32)
    gt2 = jax.random.uniform(j2, (B, N2, 3), dtype=jnp.float32)
    conf2 = jax.random.uniform(j3, (B, N2, 1), dtype=jnp.float32,
                               minval=0.1, maxval=1.0)
    mask2 = jax.nn.one_hot(jax.random.randint(j4, (B, N2), 0, P), P,
                           dtype=jnp.float32)
    cfg = dict(type_l='L1', multi_head=True, self_su=False, contain_bg=False)
    check(arti_nocs_loss(nocs2, gt2, conf2, mask2, tile_points=4096, **cfg),
          _reference_loss(nocs2, gt2, conf2, mask2, **cfg))

    # 2b) Default budget-driven tile on the same data -> single big tile,
    #     exercises the fori_loop strip path.
    cfg = dict(type_l='L2', multi_head=True, self_su=True, contain_bg=True)
    check(arti_nocs_loss(nocs2, gt2, conf2, mask2, **cfg),
          _reference_loss(nocs2, gt2, conf2, mask2, **cfg))

    # 3) B == 1: two-way split of the reduction axis (v7x megacore path).
    N3 = 5000
    m1, m2, m3 = jax.random.split(jax.random.PRNGKey(2), 3)
    nocs3 = jax.random.uniform(m1, (1, N3, 3), dtype=jnp.float32)
    gt3 = jax.random.uniform(m2, (1, N3, 3), dtype=jnp.float32)
    conf3 = jax.random.uniform(m3, (1, N3, 1), dtype=jnp.float32,
                               minval=0.1, maxval=1.0)
    cfg = dict(type_l='L1', multi_head=False, self_su=True, contain_bg=True)
    check(arti_nocs_loss(nocs3, gt3, conf3, **cfg),
          _reference_loss(nocs3, gt3, conf3, **cfg))

    # 4) Single-head defaults (L2, no self-supervision).
    check(arti_nocs_loss(nocs[:, :, :3], nocs_gt, confidence),
          _reference_loss(nocs[:, :, :3], nocs_gt, confidence))

    # 5) bf16 inputs (halved HBM traffic); in-kernel accumulation stays f32.
    cfg = dict(type_l='L2', multi_head=True, self_su=True, contain_bg=True)
    nb, gb, cb, mb = (x.astype(jnp.bfloat16)
                      for x in (nocs, nocs_gt, confidence, mask_array))
    check(arti_nocs_loss(nb, gb, cb, mb, **cfg),
          _reference_loss(nb.astype(jnp.float32), gb.astype(jnp.float32),
                          cb.astype(jnp.float32), mb.astype(jnp.float32),
                          **cfg))

    print("KERNEL_OK")
</pallas_src>

<mosaic_0001>
module attributes {stable_mosaic.version = 11 : i64} {
  func.func @kernel(%arg0: i32, %arg1: i32, %arg2: i32, %arg3: memref<1x12x16x128xf32, #tpu.memory_space<vmem>>, %arg4: memref<1x3x16x128xf32, #tpu.memory_space<vmem>>, %arg5: memref<1x1x16x128xf32, #tpu.memory_space<vmem>>, %arg6: memref<1x4x16x128xf32, #tpu.memory_space<vmem>>, %arg7: memref<1x1x1x1xf32, #tpu.memory_space<vmem>>, %arg8: memref<16x128xf32, #tpu.memory_space<vmem>>) attributes {dimension_semantics = [#tpu.dimension_semantics<parallel>, #tpu.dimension_semantics<parallel>, #tpu.dimension_semantics<arbitrary>], iteration_bounds = array<i64: 1, 2, 1>, scalar_prefetch = 0 : i64, scratch_operands = 1 : i64, tpu.core_type = #tpu.core_type<tc>, window_params = [{transform_indices = @transform_0, window_bounds = array<i64: 1, 12, 16, 128>}, {transform_indices = @transform_1, window_bounds = array<i64: 1, 3, 16, 128>}, {transform_indices = @transform_2, window_bounds = array<i64: 1, 1, 16, 128>}, {transform_indices = @transform_3, window_bounds = array<i64: 1, 4, 16, 128>}, {transform_indices = @transform_4, window_bounds = array<i64: 1, 1, 1, 1>}]} {
    %c0_i32 = arith.constant 0 : i32
    %0 = arith.cmpi eq, %arg2, %c0_i32 : i32
    %1 = arith.extui %0 : i1 to i32
    %c0_i32_0 = arith.constant 0 : i32
    %2 = arith.cmpi ne, %1, %c0_i32_0 : i32
    scf.if %2 {
      %cst_60 = arith.constant 0.000000e+00 : f32
      %82 = vector.broadcast %cst_60 : f32 to vector<16x128xf32>
      %c0_61 = arith.constant 0 : index
      %c0_62 = arith.constant 0 : index
      %83 = vector.load %arg8[%c0_61, %c0_62] : memref<16x128xf32, #tpu.memory_space<vmem>>, vector<16x128xf32>
      tpu.vector_store %arg8[%c0_61, %c0_62], %82 {strides = array<i32>} : memref<16x128xf32, #tpu.memory_space<vmem>>, vector<16x128xf32>,
    } else {
    }
    %c0 = arith.constant 0 : index
    %c0_1 = arith.constant 0 : index
    %c0_2 = arith.constant 0 : index
    %c0_3 = arith.constant 0 : index
    %3 = vector.load %arg4[%c0, %c0_1, %c0_2, %c0_3] : memref<1x3x16x128xf32, #tpu.memory_space<vmem>>, vector<1x1x16x128xf32>
    %4 = vector.shape_cast %3 : vector<1x1x16x128xf32> to vector<16x128xf32>
    %c0_4 = arith.constant 0 : index
    %c1 = arith.constant 1 : index
    %c0_5 = arith.constant 0 : index
    %c0_6 = arith.constant 0 : index
    %5 = vector.load %arg4[%c0_4, %c1, %c0_5, %c0_6] : memref<1x3x16x128xf32, #tpu.memory_space<vmem>>, vector<1x1x16x128xf32>
    %6 = vector.shape_cast %5 : vector<1x1x16x128xf32> to vector<16x128xf32>
    %c0_7 = arith.constant 0 : index
    %c2 = arith.constant 2 : index
    %c0_8 = arith.constant 0 : index
    %c0_9 = arith.constant 0 : index
    %7 = vector.load %arg4[%c0_7, %c2, %c0_8, %c0_9] : memref<1x3x16x128xf32, #tpu.memory_space<vmem>>, vector<1x1x16x128xf32>
    %8 = vector.shape_cast %7 : vector<1x1x16x128xf32> to vector<16x128xf32>
    %c0_10 = arith.constant 0 : index
    %c0_11 = arith.constant 0 : index
    %c0_12 = arith.constant 0 : index
    %c0_13 = arith.constant 0 : index
    %9 = vector.load %arg5[%c0_10, %c0_11, %c0_12, %c0_13] : memref<1x1x16x128xf32, #tpu.memory_space<vmem>>, vector<1x1x16x128xf32>
    %10 = vector.shape_cast %9 : vector<1x1x16x128xf32> to vector<16x128xf32>
    %11 = math.log %10 : vector<16x128xf32>
    %cst = arith.constant 0.000000e+00 : f32
    %12 = vector.broadcast %cst : f32 to vector<16x128xf32>
    %c0_14 = arith.constant 0 : index
    %c3 = arith.constant 3 : index
    %c0_15 = arith.constant 0 : index
    %c0_16 = arith.constant 0 : index
    %13 = vector.load %arg3[%c0_14, %c3, %c0_15, %c0_16] : memref<1x12x16x128xf32, #tpu.memory_space<vmem>>, vector<1x1x16x128xf32>
    %14 = vector.shape_cast %13 : vector<1x1x16x128xf32> to vector<16x128xf32>
    %15 = arith.subf %14, %4 : vector<16x128xf32>
    %16 = arith.mulf %15, %15 : vector<16x128xf32>
    %c0_17 = arith.constant 0 : index
    %c4 = arith.constant 4 : index
    %c0_18 = arith.constant 0 : index
    %c0_19 = arith.constant 0 : index
    %17 = vector.load %arg3[%c0_17, %c4, %c0_18, %c0_19] : memref<1x12x16x128xf32, #tpu.memory_space<vmem>>, vector<1x1x16x128xf32>
    %18 = vector.shape_cast %17 : vector<1x1x16x128xf32> to vector<16x128xf32>
    %19 = arith.subf %18, %6 : vector<16x128xf32>
    %20 = arith.mulf %19, %19 : vector<16x128xf32>
    %21 = arith.addf %16, %20 : vector<16x128xf32>
    %c0_20 = arith.constant 0 : index
    %c5 = arith.constant 5 : index
    %c0_21 = arith.constant 0 : index
    %c0_22 = arith.constant 0 : index
    %22 = vector.load %arg3[%c0_20, %c5, %c0_21, %c0_22] : memref<1x12x16x128xf32, #tpu.memory_space<vmem>>, vector<1x1x16x128xf32>
    %23 = vector.shape_cast %22 : vector<1x1x16x128xf32> to vector<16x128xf32>
    %24 = arith.subf %23, %8 : vector<16x128xf32>
    %25 = arith.mulf %24, %24 : vector<16x128xf32>
    %26 = arith.addf %21, %25 : vector<16x128xf32>
    %27 = math.sqrt %26 : vector<16x128xf32>
    %c0_23 = arith.constant 0 : index
    %c1_24 = arith.constant 1 : index
    %c0_25 = arith.constant 0 : index
    %c0_26 = arith.constant 0 : index
    %28 = vector.load %arg6[%c0_23, %c1_24, %c0_25, %c0_26] : memref<1x4x16x128xf32, #tpu.memory_space<vmem>>, vector<1x1x16x128xf32>
    %29 = vector.shape_cast %28 : vector<1x1x16x128xf32> to vector<16x128xf32>
    %30 = arith.mulf %29, %27 : vector<16x128xf32>
    %31 = arith.mulf %30, %10 : vector<16x128xf32>
    %32 = arith.addf %12, %31 : vector<16x128xf32>
    %c0_27 = arith.constant 0 : index
    %c6 = arith.constant 6 : index
    %c0_28 = arith.constant 0 : index
    %c0_29 = arith.constant 0 : index
    %33 = vector.load %arg3[%c0_27, %c6, %c0_28, %c0_29] : memref<1x12x16x128xf32, #tpu.memory_space<vmem>>, vector<1x1x16x128xf32>
    %34 = vector.shape_cast %33 : vector<1x1x16x128xf32> to vector<16x128xf32>
    %35 = arith.subf %34, %4 : vector<16x128xf32>
    %36 = arith.mulf %35, %35 : vector<16x128xf32>
    %c0_30 = arith.constant 0 : index
    %c7 = arith.constant 7 : index
    %c0_31 = arith.constant 0 : index
    %c0_32 = arith.constant 0 : index
    %37 = vector.load %arg3[%c0_30, %c7, %c0_31, %c0_32] : memref<1x12x16x128xf32, #tpu.memory_space<vmem>>, vector<1x1x16x128xf32>
    %38 = vector.shape_cast %37 : vector<1x1x16x128xf32> to vector<16x128xf32>
    %39 = arith.subf %38, %6 : vector<16x128xf32>
    %40 = arith.mulf %39, %39 : vector<16x128xf32>
    %41 = arith.addf %36, %40 : vector<16x128xf32>
    %c0_33 = arith.constant 0 : index
    %c8 = arith.constant 8 : index
    %c0_34 = arith.constant 0 : index
    %c0_35 = arith.constant 0 : index
    %42 = vector.load %arg3[%c0_33, %c8, %c0_34, %c0_35] : memref<1x12x16x128xf32, #tpu.memory_space<vmem>>, vector<1x1x16x128xf32>
    %43 = vector.shape_cast %42 : vector<1x1x16x128xf32> to vector<16x128xf32>
    %44 = arith.subf %43, %8 : vector<16x128xf32>
    %45 = arith.mulf %44, %44 : vector<16x128xf32>
    %46 = arith.addf %41, %45 : vector<16x128xf32>
    %47 = math.sqrt %46 : vector<16x128xf32>
    %c0_36 = arith.constant 0 : index
    %c2_37 = arith.constant 2 : index
    %c0_38 = arith.constant 0 : index
    %c0_39 = arith.constant 0 : index
    %48 = vector.load %arg6[%c0_36, %c2_37, %c0_38, %c0_39] : memref<1x4x16x128xf32, #tpu.memory_space<vmem>>, vector<1x1x16x128xf32>
    %49 = vector.shape_cast %48 : vector<1x1x16x128xf32> to vector<16x128xf32>
    %50 = arith.mulf %49, %47 : vector<16x128xf32>
    %51 = arith.mulf %50, %10 : vector<16x128xf32>
    %52 = arith.addf %32, %51 : vector<16x128xf32>
    %c0_40 = arith.constant 0 : index
    %c9 = arith.constant 9 : index
    %c0_41 = arith.constant 0 : index
    %c0_42 = arith.constant 0 : index
    %53 = vector.load %arg3[%c0_40, %c9, %c0_41, %c0_42] : memref<1x12x16x128xf32, #tpu.memory_space<vmem>>, vector<1x1x16x128xf32>
    %54 = vector.shape_cast %53 : vector<1x1x16x128xf32> to vector<16x128xf32>
    %55 = arith.subf %54, %4 : vector<16x128xf32>
    %56 = arith.mulf %55, %55 : vector<16x128xf32>
    %c0_43 = arith.constant 0 : index
    %c10 = arith.constant 10 : index
    %c0_44 = arith.constant 0 : index
    %c0_45 = arith.constant 0 : index
    %57 = vector.load %arg3[%c0_43, %c10, %c0_44, %c0_45] : memref<1x12x16x128xf32, #tpu.memory_space<vmem>>, vector<1x1x16x128xf32>
    %58 = vector.shape_cast %57 : vector<1x1x16x128xf32> to vector<16x128xf32>
    %59 = arith.subf %58, %6 : vector<16x128xf32>
    %60 = arith.mulf %59, %59 : vector<16x128xf32>
    %61 = arith.addf %56, %60 : vector<16x128xf32>
    %c0_46 = arith.constant 0 : index
    %c11 = arith.constant 11 : index
    %c0_47 = arith.constant 0 : index
    %c0_48 = arith.constant 0 : index
    %62 = vector.load %arg3[%c0_46, %c11, %c0_47, %c0_48] : memref<1x12x16x128xf32, #tpu.memory_space<vmem>>, vector<1x1x16x128xf32>
    %63 = vector.shape_cast %62 : vector<1x1x16x128xf32> to vector<16x128xf32>
    %64 = arith.subf %63, %8 : vector<16x128xf32>
    %65 = arith.mulf %64, %64 : vector<16x128xf32>
    %66 = arith.addf %61, %65 : vector<16x128xf32>
    %67 = math.sqrt %66 : vector<16x128xf32>
    %c0_49 = arith.constant 0 : index
    %c3_50 = arith.constant 3 : index
    %c0_51 = arith.constant 0 : index
    %c0_52 = arith.constant 0 : index
    %68 = vector.load %arg6[%c0_49, %c3_50, %c0_51, %c0_52] : memref<1x4x16x128xf32, #tpu.memory_space<vmem>>, vector<1x1x16x128xf32>
    %69 = vector.shape_cast %68 : vector<1x1x16x128xf32> to vector<16x128xf32>
    %70 = arith.mulf %69, %67 : vector<16x128xf32>
    %71 = arith.mulf %70, %10 : vector<16x128xf32>
    %72 = arith.addf %52, %71 : vector<16x128xf32>
    %cst_53 = arith.constant -3.000000e-01 : f32
    %73 = vector.broadcast %cst_53 : f32 to vector<16x128xf32>
    %74 = arith.mulf %73, %11 : vector<16x128xf32>
    %75 = arith.addf %72, %74 : vector<16x128xf32>
    %c0_54 = arith.constant 0 : index
    %c0_55 = arith.constant 0 : index
    %76 = vector.load %arg8[%c0_54, %c0_55] : memref<16x128xf32, #tpu.memory_space<vmem>>, vector<16x128xf32>
    %77 = arith.addf %76, %75 : vector<16x128xf32>
    %c0_56 = arith.constant 0 : index
    %c0_57 = arith.constant 0 : index
    %78 = vector.load %arg8[%c0_56, %c0_57] : memref<16x128xf32, #tpu.memory_space<vmem>>, vector<16x128xf32>
    tpu.vector_store %arg8[%c0_56, %c0_57], %77 {strides = array<i32>} : memref<16x128xf32, #tpu.memory_space<vmem>>, vector<16x128xf32>,
    %c0_i32_58 = arith.constant 0 : i32
    %79 = arith.cmpi eq, %arg2, %c0_i32_58 : i32
    %80 = arith.extui %79 : i1 to i32
    %c0_i32_59 = arith.constant 0 : i32
    %81 = arith.cmpi ne, %80, %c0_i32_59 : i32
    scf.if %81 {
      %c0_60 = arith.constant 0 : index
      %c0_61 = arith.constant 0 : index
      %82 = vector.load %arg8[%c0_60, %c0_61] : memref<16x128xf32, #tpu.memory_space<vmem>>, vector<16x128xf32>
      %cst_62 = arith.constant dense<0.000000e+00> : vector<16xf32>
      %83 = vector.multi_reduction <add>, %82, %cst_62 [1] : vector<16x128xf32> to vector<16xf32>
      %84 = vector.shape_cast %83 : vector<16xf32> to vector<16x1xf32>
      %cst_63 = arith.constant dense<0.000000e+00> : vector<1xf32>
      %85 = vector.multi_reduction <add>, %84, %cst_63 [0] : vector<16x1xf32> to vector<1xf32>
      %86 = vector.shape_cast %85 : vector<1xf32> to vector<1x1xf32>
      %cst_64 = arith.constant 1.000000e-03 : f32
      %87 = vector.broadcast %cst_64 : f32 to vector<1x1xf32>
      %88 = arith.mulf %86, %87 : vector<1x1xf32>
      %89 = vector.shape_cast %88 : vector<1x1xf32> to vector<1x1x1x1xf32>
      %c0_65 = arith.constant 0 : index
      %c0_66 = arith.constant 0 : index
      %c0_67 = arith.constant 0 : index
      %c0_68 = arith.constant 0 : index
      %90 = vector.load %arg7[%c0_65, %c0_66, %c0_67, %c0_68] : memref<1x1x1x1xf32, #tpu.memory_space<vmem>>, vector<1x1x1x1xf32>
      tpu.vector_store %arg7[%c0_65, %c0_66, %c0_67, %c0_68], %89 {strides = array<i32>} : memref<1x1x1x1xf32, #tpu.memory_space<vmem>>, vector<1x1x1x1xf32>,
    } else {
    }
    return
  }
  func.func @transform_0(%arg0: i32, %arg1: i32, %arg2: i32) -> (i32, i32, i32, i32) {
    %c1_i32 = arith.constant 1 : i32
    %0 = arith.muli %arg0, %c1_i32 : i32
    %1 = arith.addi %0, %arg2 : i32
    %c0_i32 = arith.constant 0 : i32
    %c0_i32_0 = arith.constant 0 : i32
    %c0_i32_1 = arith.constant 0 : i32
    return %arg1, %c0_i32, %1, %c0_i32_0 : i32, i32, i32, i32
  }
  func.func @transform_1(%arg0: i32, %arg1: i32, %arg2: i32) -> (i32, i32, i32, i32) {
    %c1_i32 = arith.constant 1 : i32
    %0 = arith.muli %arg0, %c1_i32 : i32
    %1 = arith.addi %0, %arg2 : i32
    %c0_i32 = arith.constant 0 : i32
    %c0_i32_0 = arith.constant 0 : i32
    %c0_i32_1 = arith.constant 0 : i32
    return %arg1, %c0_i32, %1, %c0_i32_0 : i32, i32, i32, i32
  }
  func.func @transform_2(%arg0: i32, %arg1: i32, %arg2: i32) -> (i32, i32, i32, i32) {
    %c1_i32 = arith.constant 1 : i32
    %0 = arith.muli %arg0, %c1_i32 : i32
    %1 = arith.addi %0, %arg2 : i32
    %c0_i32 = arith.constant 0 : i32
    %c0_i32_0 = arith.constant 0 : i32
    %c0_i32_1 = arith.constant 0 : i32
    return %arg1, %c0_i32, %1, %c0_i32_0 : i32, i32, i32, i32
  }
  func.func @transform_3(%arg0: i32, %arg1: i32, %arg2: i32) -> (i32, i32, i32, i32) {
    %c1_i32 = arith.constant 1 : i32
    %0 = arith.muli %arg0, %c1_i32 : i32
    %1 = arith.addi %0, %arg2 : i32
    %c0_i32 = arith.constant 0 : i32
    %c0_i32_0 = arith.constant 0 : i32
    %c0_i32_1 = arith.constant 0 : i32
    return %arg1, %c0_i32, %1, %c0_i32_0 : i32, i32, i32, i32
  }
  func.func @transform_4(%arg0: i32, %arg1: i32, %arg2: i32) -> (i32, i32, i32, i32) {
    %c0_i32 = arith.constant 0 : i32
    %c0_i32_0 = arith.constant 0 : i32
    %c0_i32_1 = arith.constant 0 : i32
    return %arg0, %arg1, %c0_i32, %c0_i32_0 : i32, i32, i32, i32
  }
}

</mosaic_0001>

<llo_original>
// kernel: tpu_custom_call.1
$region0: #{tpu_custom_call.1}
  #allocation0 [shape = 'u32[]', space=smem, size = 0x4, offset = 0x4, fixed_abs, tag = 'smem constant byte address 0x4 - core index']
  #allocation1 [shape = 'u32[144,128]{1,0:T(1,128)}', space=vmem, size = 0x12000, scoped, tag = 'internal scratch']
  #allocation2 [shape = 'f32[16,128]{1,0:T(8,128)}', space=vmem, size = 0x2000, scoped, tag = 'scratch operand']
  %s0 = inlined_call_operand.hbm [shape: f32[2,12,16,128], index: 0, kind: input, shape index: {}]
  %s1 = inlined_call_operand.hbm [shape: f32[2,3,16,128], index: 1, kind: input, shape index: {}]
  %s2 = inlined_call_operand.hbm [shape: f32[2,1,16,128], index: 2, kind: input, shape index: {}]
  %s3 = inlined_call_operand.hbm [shape: f32[2,4,16,128], index: 3, kind: input, shape index: {}]
  %s4 = inlined_call_operand.vmem [shape: f32[1,2,1,1], index: 4, kind: output, shape index: {}]
  %s5 = sld [smem:[#allocation0]]
  $region73: #{tpu_custom_call.1} parent=0
    _
  %s7 = ssub.s32 1, %s5
  %s8 = scalar_select 0, %s7, %s5
  $region1: #{tpu_custom_call.1} parent=0
    #allocation3 [shape = 'u8[196608]{0}', space=vmem, size = 0x30000, scoped, tag = 'input window, operand 0']
    #allocation4 [shape = 's32[2]{0}', space=sflag, size = 0x8, scoped, tag = 'scoped memory for tpu_custom_call.1']
    #allocation5 [shape = 'u8[49152]{0}', space=vmem, size = 0xc000, scoped, tag = 'input window, operand 1']
    #allocation6 [shape = 's32[2]{0}', space=sflag, size = 0x8, scoped, tag = 'scoped memory for tpu_custom_call.1']
    #allocation7 [shape = 'u8[16384]{0}', space=vmem, size = 0x4000, scoped, tag = 'input window, operand 2']
    #allocation8 [shape = 'u8[65536]{0}', space=vmem, size = 0x10000, scoped, tag = 'input window, operand 3']
    #allocation9 [shape = 's32[2]{0}', space=sflag, size = 0x8, scoped, tag = 'scoped memory for tpu_custom_call.1']
    %9 = vsyncpa [#allocation4], 0
    %s10 = scalar_lea.sflag [#allocation4], 1
    %11 = vsyncpa %s10, 0
    %12 = vsyncpa [#allocation6], 0
    %s13 = scalar_lea.sflag [#allocation6], 1
    %14 = vsyncpa %s13, 0
    %15 = vsyncpa [#allocation9], 0
    %s16 = scalar_lea.sflag [#allocation9], 1
    %17 = vsyncpa %s16, 0
    loop: start=0, step=1, limit=4
    $region2: #{tpu_custom_call.1} parent=1 // loop_pre_header
      _
    $region3: #{tpu_custom_call.1} parent=1 // loop_header
      %s19 = sphi 0, %s23
      %p20 = scmp.ge.s32.totalorder %s19, 4
      %s26 = sphi 0, %s45
      %s27 = sphi 0, %s41
      %s28 = sphi 0, %s37
      %s29 = sphi 0, %s26
      %s30 = sphi 0, %s27
      %s31 = sphi 0, %s28
      %s32 = sphi 0, %s29
      %s33 = sphi 0, %s30
      %s34 = sphi 0, %s31
      %s52 = sphi 0, %s54
      %s55 = sphi 0, %s52
      %s56 = sphi 0, %s55
      %s72 = sphi 0, %s56
      %s82 = sphi 0, %s84
      %s85 = sphi 0, %s82
      %s86 = sphi 0, %s85
      %s102 = sphi 0, %s86
      %s112 = sphi 0, %s114
      %s115 = sphi 0, %s112
      %s116 = sphi 0, %s115
      %s132 = sphi 0, %s116
      %s142 = sphi 0, %s144
      %s145 = sphi 0, %s142
      %s146 = sphi 0, %s145
      %s162 = sphi 0, %s146
      %s170 = sphi 0, %s172
      %s173 = sphi 0, %s170
      %s174 = sphi 0, %s173
      %s190 = sphi 0, %s174
    $region4: #{tpu_custom_call.1} parent=1 // loop_header_branch
      %22 = sbr.rel (%p20) target = $region8
    $region5: #{tpu_custom_call.1} parent=1 // loop_body
      %s24 = ssub.s32 %s19, 1
      %s25 = ssub.s32 %s19, 2
      %s35 = sadd.s32 1, %s28
      %p36 = scmp.ge.s32.totalorder %s35, 1
      %s37 = scalar_select %p36, 0, %s35
      %s38 = sadd.s32 1, %s27
      %s39 = scalar_select %p36, %s38, %s27
      %p40 = scmp.ge.s32.totalorder %s39, 2
      %s41 = scalar_select %p40, 0, %s39
      %s42 = sadd.s32 1, %s26
      %s43 = scalar_select %p40, %s42, %s26
      %p44 = scmp.ge.s32.totalorder %s43, 1
      %s45 = scalar_select %p44, 0, %s43
      %s46 = sadd.s32 %s26, %s28
      %s47 = sadd.s32 %s45, %s37
      %s48 = ssub.s32 %s27, %s41
      %s49 = ssub.s32 %s46, %s47
      %s50 = sor.u32 %s48, %s49
      %p51 = scmp.eq.s32.totalorder %s50, 0
      %s53 = sadd.s32 %s52, 1
      %s54 = scalar_select %p51, %s52, %s53
      %p57 = pneg %p51
      %p58 = scmp.eq.s32.totalorder %s19, 1
      %p59 = por %p57, %p58
      %p60 = scmp.ne.s32.totalorder %s52, %s55
      %p61 = scmp.eq.s32.totalorder %s19, 0
      %p62 = por %p60, %p61
      %p63 = scmp.ne.s32.totalorder %s52, %s55
      %p64 = scmp.eq.s32.totalorder %s24, 1
      %p65 = por %p63, %p64
      %p66 = scmp.ne.s32.totalorder %s55, %s56
      %p67 = scmp.eq.s32.totalorder %s24, 0
      %p68 = por %p66, %p67
      %p69 = scmp.ne.s32.totalorder %s55, %s56
      %p70 = scmp.eq.s32.totalorder %s25, 1
      %p71 = por %p69, %p70
      %p73 = scmp.ne.s32.totalorder %s56, %s72
      %p74 = scmp.eq.s32.totalorder %s25, 0
      %p75 = por %p73, %p74
      %s76 = sadd.s32 %s26, %s28
      %s77 = sadd.s32 %s45, %s37
      %s78 = ssub.s32 %s27, %s41
      %s79 = ssub.s32 %s76, %s77
      %s80 = sor.u32 %s78, %s79
      %p81 = scmp.eq.s32.totalorder %s80, 0
      %s83 = sadd.s32 %s82, 1
      %s84 = scalar_select %p81, %s82, %s83
      %p87 = pneg %p81
      %p88 = scmp.eq.s32.totalorder %s19, 1
      %p89 = por %p87, %p88
      %p90 = scmp.ne.s32.totalorder %s82, %s85
      %p91 = scmp.eq.s32.totalorder %s19, 0
      %p92 = por %p90, %p91
      %p93 = scmp.ne.s32.totalorder %s82, %s85
      %p94 = scmp.eq.s32.totalorder %s24, 1
      %p95 = por %p93, %p94
      %p96 = scmp.ne.s32.totalorder %s85, %s86
      %p97 = scmp.eq.s32.totalorder %s24, 0
      %p98 = por %p96, %p97
      %p99 = scmp.ne.s32.totalorder %s85, %s86
      %p100 = scmp.eq.s32.totalorder %s25, 1
      %p101 = por %p99, %p100
      %p103 = scmp.ne.s32.totalorder %s86, %s102
      %p104 = scmp.eq.s32.totalorder %s25, 0
      %p105 = por %p103, %p104
      %s106 = sadd.s32 %s26, %s28
      %s107 = sadd.s32 %s45, %s37
      %s108 = ssub.s32 %s27, %s41
      %s109 = ssub.s32 %s106, %s107
      %s110 = sor.u32 %s108, %s109
      %p111 = scmp.eq.s32.totalorder %s110, 0
      %s113 = sadd.s32 %s112, 1
      %s114 = scalar_select %p111, %s112, %s113
      %p117 = pneg %p111
      %p118 = scmp.eq.s32.totalorder %s19, 1
      %p119 = por %p117, %p118
      %p120 = scmp.ne.s32.totalorder %s112, %s115
      %p121 = scmp.eq.s32.totalorder %s19, 0
      %p122 = por %p120, %p121
      %p123 = scmp.ne.s32.totalorder %s112, %s115
      %p124 = scmp.eq.s32.totalorder %s24, 1
      %p125 = por %p123, %p124
      %p126 = scmp.ne.s32.totalorder %s115, %s116
      %p127 = scmp.eq.s32.totalorder %s24, 0
      %p128 = por %p126, %p127
      %p129 = scmp.ne.s32.totalorder %s115, %s116
      %p130 = scmp.eq.s32.totalorder %s25, 1
      %p131 = por %p129, %p130
      %p133 = scmp.ne.s32.totalorder %s116, %s132
      %p134 = scmp.eq.s32.totalorder %s25, 0
      %p135 = por %p133, %p134
      %s136 = sadd.s32 %s26, %s28
      %s137 = sadd.s32 %s45, %s37
      %s138 = ssub.s32 %s27, %s41
      %s139 = ssub.s32 %s136, %s137
      %s140 = sor.u32 %s138, %s139
      %p141 = scmp.eq.s32.totalorder %s140, 0
      %s143 = sadd.s32 %s142, 1
      %s144 = scalar_select %p141, %s142, %s143
      %p147 = pneg %p141
      %p148 = scmp.eq.s32.totalorder %s19, 1
      %p149 = por %p147, %p148
      %p150 = scmp.ne.s32.totalorder %s142, %s145
      %p151 = scmp.eq.s32.totalorder %s19, 0
      %p152 = por %p150, %p151
      %p153 = scmp.ne.s32.totalorder %s142, %s145
      %p154 = scmp.eq.s32.totalorder %s24, 1
      %p155 = por %p153, %p154
      %p156 = scmp.ne.s32.totalorder %s145, %s146
      %p157 = scmp.eq.s32.totalorder %s24, 0
      %p158 = por %p156, %p157
      %p159 = scmp.ne.s32.totalorder %s145, %s146
      %p160 = scmp.eq.s32.totalorder %s25, 1
      %p161 = por %p159, %p160
      %p163 = scmp.ne.s32.totalorder %s146, %s162
      %p164 = scmp.eq.s32.totalorder %s25, 0
      %p165 = por %p163, %p164
      %s166 = ssub.s32 %s26, %s45
      %s167 = ssub.s32 %s27, %s41
      %s168 = sor.u32 %s166, %s167
      %p169 = scmp.eq.s32.totalorder %s168, 0
      %s171 = sadd.s32 %s170, 1
      %s172 = scalar_select %p169, %s170, %s171
      %p175 = pneg %p169
      %p176 = scmp.eq.s32.totalorder %s19, 1
      %p177 = por %p175, %p176
      %p178 = scmp.ne.s32.totalorder %s170, %s173
      %p179 = scmp.eq.s32.totalorder %s19, 0
      %p180 = por %p178, %p179
      %p181 = scmp.ne.s32.totalorder %s170, %s173
      %p182 = scmp.eq.s32.totalorder %s24, 1
      %p183 = por %p181, %p182
      %p184 = scmp.ne.s32.totalorder %s173, %s174
      %p185 = scmp.eq.s32.totalorder %s24, 0
      %p186 = por %p184, %p185
      %p187 = scmp.ne.s32.totalorder %s173, %s174
      %p188 = scmp.eq.s32.totalorder %s25, 1
      %p189 = por %p187, %p188
      %p191 = scmp.ne.s32.totalorder %s174, %s190
      %p192 = scmp.eq.s32.totalorder %s25, 0
      %p193 = por %p191, %p192
      %p194 = scmp.le.s32.totalorder 1, %s19
      %p195 = scmp.lt.s32.totalorder %s19, 3
      %p196 = pnand %p194, %p195
      %p197 = pneg %p196
      // Predicated region
      $region9: #{tpu_custom_call.1} parent=5 // pred_check
        _
      $region10: #{tpu_custom_call.1} parent=5 // pred_check_branch
        %199 = sbr.rel (%p196) target = $region12
      $region11: #{tpu_custom_call.1} parent=5 // pred_region
        %s200 = ssub.s32 %s19, 1
      $region12: #{tpu_custom_call.1} parent=5 // pred_fallthru
        _
      %p201 = scmp.lt.s32.totalorder %s19, 2
      // Predicated region
      $region13: #{tpu_custom_call.1} parent=5 // pred_check
        %p202 = pneg %p201
      $region14: #{tpu_custom_call.1} parent=5 // pred_check_branch
        %204 = sbr.rel (%p202) target = $region16
      $region15: #{tpu_custom_call.1} parent=5 // pred_region
        // Predicated region
        $region17: #{tpu_custom_call.1} parent=15 // pred_check
          %p205 = pneg %p62
        $region18: #{tpu_custom_call.1} parent=15 // pred_check_branch
          %207 = sbr.rel (%p205) target = $region20
        $region19: #{tpu_custom_call.1} parent=15 // pred_region
          %s208 = sand.u32 %s52, 1
          %s209 = scalar_lea.sflag [#allocation4], %s208
          %s210 = sand.u32 %s52, 1
          %s211 = smul.addr %s210, 192
          %s212 = scalar_lea.vmem [#allocation3], %s211
          %s213 = sadd.s32 %s26, %s28
          %s214 = smul.u32 2, %s213
          %s216 = ssub.s32 3072, 3072
          %217 = vsyncadd %s209, %s216
          %s218 = smul.addr %s27, 24
          %s219 = sadd.s32 %s214, %s218
          %s220 = smul.addr %s219, 128
          %s221 = scalar_lea.hbm %s0, %s220
          %s222 = sshll.u32 %s212, 4
          %s223 = int_to_ptr.vmem [resolvable:$true] %s222
          %228 = dma.hbm_to_vmem [thread:$0]  %s221, 3072, %s223, %s209, 128, 128, 8
        $region20: #{tpu_custom_call.1} parent=15 // pred_fallthru
          _
        // Predicated region
        $region21: #{tpu_custom_call.1} parent=15 // pred_check
          %p229 = pneg %p92
        $region22: #{tpu_custom_call.1} parent=15 // pred_check_branch
          %231 = sbr.rel (%p229) target = $region24
        $region23: #{tpu_custom_call.1} parent=15 // pred_region
          %s232 = sand.u32 %s19, 1
          %s233 = scalar_lea.sflag [#allocation6], %s232
          %s234 = sand.u32 %s82, 1
          %s235 = smul.addr %s234, 48
          %s236 = scalar_lea.vmem [#allocation5], %s235
          %s237 = sadd.s32 %s26, %s28
          %s238 = smul.u32 2, %s237
          %s240 = ssub.s32 768, 768
          %241 = vsyncadd %s233, %s240
          %s242 = smul.addr %s27, 6
          %s243 = sadd.s32 %s238, %s242
          %s244 = smul.addr %s243, 128
          %s245 = scalar_lea.hbm %s1, %s244
          %s246 = sshll.u32 %s236, 4
          %s247 = int_to_ptr.vmem [resolvable:$true] %s246
          %252 = dma.hbm_to_vmem [thread:$0]  %s245, 768, %s247, %s233, 128, 128, 8
        $region24: #{tpu_custom_call.1} parent=15 // pred_fallthru
          _
        // Predicated region
        $region25: #{tpu_custom_call.1} parent=15 // pred_check
          %p253 = pneg %p122
        $region26: #{tpu_custom_call.1} parent=15 // pred_check_branch
          %255 = sbr.rel (%p253) target = $region28
        $region27: #{tpu_custom_call.1} parent=15 // pred_region
          %s256 = sand.u32 %s19, 1
          %s257 = scalar_lea.sflag [#allocation6], %s256
          %s258 = sand.u32 %s112, 1
          %s259 = smul.addr %s258, 16
          %s260 = scalar_lea.vmem [#allocation7], %s259
          %s261 = sadd.s32 %s26, %s28
          %s262 = smul.u32 2, %s261
          %s264 = ssub.s32 256, 256
          %265 = vsyncadd %s257, %s264
          %s266 = smul.addr %s27, 2
          %s267 = sadd.s32 %s262, %s266
          %s268 = smul.addr %s267, 128
          %s269 = scalar_lea.hbm %s2, %s268
          %s270 = sshll.u32 %s260, 4
          %s271 = int_to_ptr.vmem [resolvable:$true] %s270
          %276 = dma.hbm_to_vmem [thread:$0]  %s269, 256, %s271, %s257, 128, 128, 8
        $region28: #{tpu_custom_call.1} parent=15 // pred_fallthru
          _
        // Predicated region
        $region29: #{tpu_custom_call.1} parent=15 // pred_check
          %p277 = pneg %p152
        $region30: #{tpu_custom_call.1} parent=15 // pred_check_branch
          %279 = sbr.rel (%p277) target = $region32
        $region31: #{tpu_custom_call.1} parent=15 // pred_region
          %s280 = sand.u32 %s142, 1
          %s281 = scalar_lea.sflag [#allocation9], %s280
          %s282 = sand.u32 %s142, 1
          %s283 = smul.addr %s282, 64
          %s284 = scalar_lea.vmem [#allocation8], %s283
          %s285 = sadd.s32 %s26, %s28
          %s286 = smul.u32 2, %s285
          %s288 = ssub.s32 1024, 1024
          %289 = vsyncadd %s281, %s288
          %s290 = smul.addr %s27, 8
          %s291 = sadd.s32 %s286, %s290
          %s292 = smul.addr %s291, 128
          %s293 = scalar_lea.hbm %s3, %s292
          %s294 = sshll.u32 %s284, 4
          %s295 = int_to_ptr.vmem [resolvable:$true] %s294
          %300 = dma.hbm_to_vmem [thread:$0]  %s293, 1024, %s295, %s281, 128, 128, 8
        $region32: #{tpu_custom_call.1} parent=15 // pred_fallthru
          _
      $region16: #{tpu_custom_call.1} parent=5 // pred_fallthru
        _
      %p301 = scmp.le.s32.totalorder 1, %s19
      %p302 = scmp.lt.s32.totalorder %s19, 3
      %p303 = pnand %p301, %p302
      %p304 = pneg %p303
      // Predicated region
      $region33: #{tpu_custom_call.1} parent=5 // pred_check
        _
      $region34: #{tpu_custom_call.1} parent=5 // pred_check_branch
        %306 = sbr.rel (%p303) target = $region36
      $region35: #{tpu_custom_call.1} parent=5 // pred_region
        %s307 = ssub.s32 %s19, 1
        %s308 = sand.u32 %s55, 1
        %s309 = scalar_lea.sflag [#allocation4], %s308
        %s310 = sand.u32 %s55, 1
        %s311 = smul.addr %s310, 192
        %s312 = scalar_lea.vmem [#allocation3], %s311
        // Predicated region
        $region37: #{tpu_custom_call.1} parent=35 // pred_check
          %p313 = pneg %p68
        $region38: #{tpu_custom_call.1} parent=35 // pred_check_branch
          %315 = sbr.rel (%p313) target = $region40
        $region39: #{tpu_custom_call.1} parent=35 // pred_region
          %316 = dma.done %s309, 3072
        $region40: #{tpu_custom_call.1} parent=35 // pred_fallthru
          _
        %s317 = sand.u32 %s24, 1
        %s318 = scalar_lea.sflag [#allocation6], %s317
        %s319 = sand.u32 %s85, 1
        %s320 = smul.addr %s319, 48
        %s321 = scalar_lea.vmem [#allocation5], %s320
        // Predicated region
        $region41: #{tpu_custom_call.1} parent=35 // pred_check
          %p322 = pneg %p98
        $region42: #{tpu_custom_call.1} parent=35 // pred_check_branch
          %324 = sbr.rel (%p322) target = $region44
        $region43: #{tpu_custom_call.1} parent=35 // pred_region
          %325 = dma.done %s318, 768
        $region44: #{tpu_custom_call.1} parent=35 // pred_fallthru
          _
        %s326 = sand.u32 %s24, 1
        %s327 = scalar_lea.sflag [#allocation6], %s326
        %s328 = sand.u32 %s115, 1
        %s329 = smul.addr %s328, 16
        %s330 = scalar_lea.vmem [#allocation7], %s329
        // Predicated region
        $region45: #{tpu_custom_call.1} parent=35 // pred_check
          %p331 = pneg %p128
        $region46: #{tpu_custom_call.1} parent=35 // pred_check_branch
          %333 = sbr.rel (%p331) target = $region48
        $region47: #{tpu_custom_call.1} parent=35 // pred_region
          %334 = dma.done %s327, 256
        $region48: #{tpu_custom_call.1} parent=35 // pred_fallthru
          _
        %s335 = sand.u32 %s145, 1
        %s336 = scalar_lea.sflag [#allocation9], %s335
        %s337 = sand.u32 %s145, 1
        %s338 = smul.addr %s337, 64
        %s339 = scalar_lea.vmem [#allocation8], %s338
        // Predicated region
        $region49: #{tpu_custom_call.1} parent=35 // pred_check
          %p340 = pneg %p158
        $region50: #{tpu_custom_call.1} parent=35 // pred_check_branch
          %342 = sbr.rel (%p340) target = $region52
        $region51: #{tpu_custom_call.1} parent=35 // pred_region
          %343 = dma.done %s336, 1024
        $region52: #{tpu_custom_call.1} parent=35 // pred_fallthru
          _
        %s344 = sand.u32 %s55, 1
        %s345 = scalar_lea.sflag [#allocation4], %s344
        %s346 = sand.u32 %s55, 1
        %s347 = smul.addr %s346, 192
        %s348 = scalar_lea.vmem [#allocation3], %s347
        %p349 = pneg %p68
        %p350 = pneg %p65
        %s351 = sand.u32 %s24, 1
        %s352 = scalar_lea.sflag [#allocation6], %s351
        %s353 = sand.u32 %s85, 1
        %s354 = smul.addr %s353, 48
        %s355 = scalar_lea.vmem [#allocation5], %s354
        %p356 = pneg %p98
        %p357 = pneg %p95
        %s358 = sand.u32 %s24, 1
        %s359 = scalar_lea.sflag [#allocation6], %s358
        %s360 = sand.u32 %s115, 1
        %s361 = smul.addr %s360, 16
        %s362 = scalar_lea.vmem [#allocation7], %s361
        %p363 = pneg %p128
        %p364 = pneg %p125
        %s365 = sand.u32 %s145, 1
        %s366 = scalar_lea.sflag [#allocation9], %s365
        %s367 = sand.u32 %s145, 1
        %s368 = smul.addr %s367, 64
        %s369 = scalar_lea.vmem [#allocation8], %s368
        %p370 = pneg %p158
        %p371 = pneg %p155
        %p372 = pneg %p186
        %p373 = pneg %p183
        %p374 = scmp.lt.s32.totalorder %s29, 0
        %s375 = scalar_select %p374, %s29, 0
        %p376 = scmp.lt.s32.totalorder %s30, 1
        %s377 = scalar_select %p376, %s30, 1
        %s378 = smul.addr %s375, 2
        %s379 = sadd.s32 %s377, %s378
        %s380 = scalar_lea.vmem %s4, %s379
        %s381 = sadd.s32 %s29, %s31
        %s382 = smul.u32 2, %s381
        %s383 = sadd.s32 %s29, %s31
        %s384 = smul.u32 2, %s383
        %s385 = sadd.s32 %s29, %s31
        %s386 = smul.u32 2, %s385
        %s387 = sadd.s32 %s29, %s31
        %s388 = smul.u32 2, %s387
        %p389 = scmp.lt.s32.totalorder %s29, 0
        %s390 = scalar_select %p389, %s29, 0
        %p391 = scmp.lt.s32.totalorder %s30, 1
        %s392 = scalar_select %p391, %s30, 1
        %s393 = smul.addr %s390, 2
        %s394 = sadd.s32 %s392, %s393
        %s395 = scalar_lea.vmem %s4, %s394
        %p396 = scmp.eq.s32.totalorder %s31, 0
        // Predicated region
        $region53: #{tpu_custom_call.1} parent=35 // pred_check
          %p397 = pneg %p396
        $region54: #{tpu_custom_call.1} parent=35 // pred_check_branch
          %399 = sbr.rel (%p397) target = $region56
        $region55: #{tpu_custom_call.1} parent=35 // pred_region
          %400 = vst [vmem:[#allocation2] sm:$0xff] 0.0
          %401 = vst [vmem:[#allocation2 + $0x8] sm:$0xff] 0.0
        $region56: #{tpu_custom_call.1} parent=35 // pred_fallthru
          _
        %v402 = vld [vmem:[%s321] sm:$0xff]
        %v403 = vld [vmem:[%s321 + $0x8] sm:$0xff]
        %s404 = scalar_lea.vmem %s321, 16 [#allocation5]
        %v405 = vld [vmem:[%s404] sm:$0xff]
        %v406 = vld [vmem:[%s404 + $0x8] sm:$0xff]
        %s407 = scalar_lea.vmem %s321, 32 [#allocation5]
        %v408 = vld [vmem:[%s407] sm:$0xff]
        %v409 = vld [vmem:[%s407 + $0x8] sm:$0xff]
        %v410 = vld [vmem:[%s330] sm:$0xff]
        %v411 = vld [vmem:[%s330 + $0x8] sm:$0xff]
        %v412 = vlog2.pop %v410
        %v413 = vmul.f32 %v412, 0.6931472
        %v414 = vlog2.pop %v411
        %v415 = vmul.f32 %v414, 0.6931472
        %s416 = scalar_lea.vmem %s312, 48 [#allocation3]
        %v417 = vld [vmem:[%s416] sm:$0xff]
        %v418 = vld [vmem:[%s416 + $0x8] sm:$0xff]
        %v419 = vsub.f32 %v417, %v402
        %v420 = vsub.f32 %v418, %v403
        %v421 = vmul.f32 %v419, %v419
        %v422 = vmul.f32 %v420, %v420
        %s423 = scalar_lea.vmem %s312, 64 [#allocation3]
        %v424 = vld [vmem:[%s423] sm:$0xff]
        %v425 = vld [vmem:[%s423 + $0x8] sm:$0xff]
        %v426 = vsub.f32 %v424, %v405
        %v427 = vsub.f32 %v425, %v406
        %v428 = vmul.f32 %v426, %v426
        %v429 = vmul.f32 %v427, %v427
        %v430 = vadd.f32 %v421, %v428
        %v431 = vadd.f32 %v422, %v429
        %s432 = scalar_lea.vmem %s312, 80 [#allocation3]
        %v433 = vld [vmem:[%s432] sm:$0xff]
        %v434 = vld [vmem:[%s432 + $0x8] sm:$0xff]
        %v435 = vsub.f32 %v433, %v408
        %v436 = vsub.f32 %v434, %v409
        %v437 = vmul.f32 %v435, %v435
        %v438 = vmul.f32 %v436, %v436
        %v439 = vadd.f32 %v430, %v437
        %v440 = vadd.f32 %v431, %v438
        %v441 = vrsqrt.pop %v439
        %v442 = vmul.f32 %v439, %v441
        %vm443 = vcmp.eq.f32.partialorder %v439, inf
        %v444 = vsel %vm443, %v439, %v442
        %vm445 = vcmp.eq.f32.partialorder %v439, 0.0
        %v446 = vand.u32 %v439, 2147483648
        %v447 = vsel %vm445, %v446, %v444
        %v448 = vrsqrt.pop %v440
        %v449 = vmul.f32 %v440, %v448
        %vm450 = vcmp.eq.f32.partialorder %v440, inf
        %v451 = vsel %vm450, %v440, %v449
        %vm452 = vcmp.eq.f32.partialorder %v440, 0.0
        %v453 = vand.u32 %v440, 2147483648
        %v454 = vsel %vm452, %v453, %v451
        %s455 = scalar_lea.vmem %s339, 16 [#allocation8]
        %v456 = vld [vmem:[%s455] sm:$0xff]
        %v457 = vld [vmem:[%s455 + $0x8] sm:$0xff]
        %v458 = vmul.f32 %v456, %v447
        %v459 = vmul.f32 %v457, %v454
        %v460 = vmul.f32 %v458, %v410
        %v461 = vmul.f32 %v459, %v411
        %v462 = vadd.f32 %v460, 0.0
        %v463 = vadd.f32 %v461, 0.0
        %s464 = scalar_lea.vmem %s312, 96 [#allocation3]
        %v465 = vld [vmem:[%s464] sm:$0xff]
        %v466 = vld [vmem:[%s464 + $0x8] sm:$0xff]
        %v467 = vsub.f32 %v465, %v402
        %v468 = vsub.f32 %v466, %v403
        %v469 = vmul.f32 %v467, %v467
        %v470 = vmul.f32 %v468, %v468
        %s471 = scalar_lea.vmem %s312, 112 [#allocation3]
        %v472 = vld [vmem:[%s471] sm:$0xff]
        %v473 = vld [vmem:[%s471 + $0x8] sm:$0xff]
        %v474 = vsub.f32 %v472, %v405
        %v475 = vsub.f32 %v473, %v406
        %v476 = vmul.f32 %v474, %v474
        %v477 = vmul.f32 %v475, %v475
        %v478 = vadd.f32 %v469, %v476
        %v479 = vadd.f32 %v470, %v477
        %s480 = scalar_lea.vmem %s312, 128 [#allocation3]
        %v481 = vld [vmem:[%s480] sm:$0xff]
        %v482 = vld [vmem:[%s480 + $0x8] sm:$0xff]
        %v483 = vsub.f32 %v481, %v408
        %v484 = vsub.f32 %v482, %v409
        %v485 = vmul.f32 %v483, %v483
        %v486 = vmul.f32 %v484, %v484
        %v487 = vadd.f32 %v478, %v485
        %v488 = vadd.f32 %v479, %v486
        %v489 = vrsqrt.pop %v487
        %v490 = vmul.f32 %v487, %v489
        %vm491 = vcmp.eq.f32.partialorder %v487, inf
        %v492 = vsel %vm491, %v487, %v490
        %vm493 = vcmp.eq.f32.partialorder %v487, 0.0
        %v494 = vand.u32 %v487, 2147483648
        %v495 = vsel %vm493, %v494, %v492
        %v496 = vrsqrt.pop %v488
        %v497 = vmul.f32 %v488, %v496
        %vm498 = vcmp.eq.f32.partialorder %v488, inf
        %v499 = vsel %vm498, %v488, %v497
        %vm500 = vcmp.eq.f32.partialorder %v488, 0.0
        %v501 = vand.u32 %v488, 2147483648
        %v502 = vsel %vm500, %v501, %v499
        %s503 = scalar_lea.vmem %s339, 32 [#allocation8]
        %v504 = vld [vmem:[%s503] sm:$0xff]
        %v505 = vld [vmem:[%s503 + $0x8] sm:$0xff]
        %v506 = vmul.f32 %v504, %v495
        %v507 = vmul.f32 %v505, %v502
        %v508 = vmul.f32 %v506, %v410
        %v509 = vmul.f32 %v507, %v411
        %v510 = vadd.f32 %v462, %v508
        %v511 = vadd.f32 %v463, %v509
        %s512 = scalar_lea.vmem %s312, 144 [#allocation3]
        %v513 = vld [vmem:[%s512] sm:$0xff]
        %v514 = vld [vmem:[%s512 + $0x8] sm:$0xff]
        %v515 = vsub.f32 %v513, %v402
        %v516 = vsub.f32 %v514, %v403
        %v517 = vmul.f32 %v515, %v515
        %v518 = vmul.f32 %v516, %v516
        %s519 = scalar_lea.vmem %s312, 160 [#allocation3]
        %v520 = vld [vmem:[%s519] sm:$0xff]
        %v521 = vld [vmem:[%s519 + $0x8] sm:$0xff]
        %v522 = vsub.f32 %v520, %v405
        %v523 = vsub.f32 %v521, %v406
        %v524 = vmul.f32 %v522, %v522
        %v525 = vmul.f32 %v523, %v523
        %v526 = vadd.f32 %v517, %v524
        %v527 = vadd.f32 %v518, %v525
        %s528 = scalar_lea.vmem %s312, 176 [#allocation3]
        %v529 = vld [vmem:[%s528] sm:$0xff]
        %v530 = vld [vmem:[%s528 + $0x8] sm:$0xff]
        %v531 = vsub.f32 %v529, %v408
        %v532 = vsub.f32 %v530, %v409
        %v533 = vmul.f32 %v531, %v531
        %v534 = vmul.f32 %v532, %v532
        %v535 = vadd.f32 %v526, %v533
        %v536 = vadd.f32 %v527, %v534
        %v537 = vrsqrt.pop %v535
        %v538 = vmul.f32 %v535, %v537
        %vm539 = vcmp.eq.f32.partialorder %v535, inf
        %v540 = vsel %vm539, %v535, %v538
        %vm541 = vcmp.eq.f32.partialorder %v535, 0.0
        %v542 = vand.u32 %v535, 2147483648
        %v543 = vsel %vm541, %v542, %v540
        %v544 = vrsqrt.pop %v536
        %v545 = vmul.f32 %v536, %v544
        %vm546 = vcmp.eq.f32.partialorder %v536, inf
        %v547 = vsel %vm546, %v536, %v545
        %vm548 = vcmp.eq.f32.partialorder %v536, 0.0
        %v549 = vand.u32 %v536, 2147483648
        %v550 = vsel %vm548, %v549, %v547
        %s551 = scalar_lea.vmem %s339, 48 [#allocation8]
        %v552 = vld [vmem:[%s551] sm:$0xff]
        %v553 = vld [vmem:[%s551 + $0x8] sm:$0xff]
        %v554 = vmul.f32 %v552, %v543
        %v555 = vmul.f32 %v553, %v550
        %v556 = vmul.f32 %v554, %v410
        %v557 = vmul.f32 %v555, %v411
        %v558 = vadd.f32 %v510, %v556
        %v559 = vadd.f32 %v511, %v557
        %v560 = vmul.f32 %v413, -0.3
        %v561 = vmul.f32 %v415, -0.3
        %v562 = vadd.f32 %v558, %v560
        %v563 = vadd.f32 %v559, %v561
        %v564 = vld [vmem:[#allocation2] sm:$0xff]
        %v565 = vld [vmem:[#allocation2 + $0x8] sm:$0xff]
        %v566 = vadd.f32 %v564, %v562
        %v567 = vadd.f32 %v565, %v563
        %568 = vst [vmem:[#allocation2] sm:$0xff] %v566
        %569 = vst [vmem:[#allocation2 + $0x8] sm:$0xff] %v567
        // Predicated region
        $region57: #{tpu_custom_call.1} parent=35 // pred_check
          %p570 = pneg %p396
        $region58: #{tpu_custom_call.1} parent=35 // pred_check_branch
          %572 = sbr.rel (%p570) target = $region60
        $region59: #{tpu_custom_call.1} parent=35 // pred_region
          %v573 = vld [vmem:[#allocation2] sm:$0xff]
          %v574 = vld [vmem:[#allocation2 + $0x8] sm:$0xff]
          %575 = vadd.xlane.f32.xlu0 %v573
          %v576 = vpop.xlane.xlu0 %575
          %577 = vadd.xlane.f32.xlu0 %v574
          %v578 = vpop.xlane.xlu0 %577
          %v579 = vadd.f32 %v576, %v578
          %v580 = vrot.slane %v579, 4
          %v581 = vadd.f32 %v579, %v580
          %v582 = vrot.slane %v581, 2
          %v583 = vadd.f32 %v581, %v582
          %v584 = vrot.slane %v583, 1
          %v585 = vadd.f32 %v583, %v584
          %v586 = vmul.f32 %v585, 0.001
          %vm587 = vcmask 0
          %588 = vst.msk [vmem:[%s395] sm:$0x1] %vm587, %v586
        $region60: #{tpu_custom_call.1} parent=35 // pred_fallthru
          _
        %p589 = scmp.lt.s32.totalorder %s29, 0
        %s590 = scalar_select %p589, %s29, 0
        %p591 = scmp.lt.s32.totalorder %s30, 1
        %s592 = scalar_select %p591, %s30, 1
        %s593 = smul.addr %s590, 2
        %s594 = sadd.s32 %s592, %s593
        %s595 = scalar_lea.vmem %s4, %s594
        // Predicated region
        $region61: #{tpu_custom_call.1} parent=35 // pred_check
          %p596 = pneg %p183
        $region62: #{tpu_custom_call.1} parent=35 // pred_check_branch
          %598 = sbr.rel (%p596) target = $region64
        $region63: #{tpu_custom_call.1} parent=35 // pred_region
          _
        $region64: #{tpu_custom_call.1} parent=35 // pred_fallthru
          _
      $region36: #{tpu_custom_call.1} parent=5 // pred_fallthru
        _
      %p599 = scmp.le.s32.totalorder 2, %s19
      // Predicated region
      $region65: #{tpu_custom_call.1} parent=5 // pred_check
        %p600 = pneg %p599
      $region66: #{tpu_custom_call.1} parent=5 // pred_check_branch
        %602 = sbr.rel (%p600) target = $region68
      $region67: #{tpu_custom_call.1} parent=5 // pred_region
        %s603 = ssub.s32 %s19, 2
        // Predicated region
        $region69: #{tpu_custom_call.1} parent=67 // pred_check
          %p604 = pneg %p189
        $region70: #{tpu_custom_call.1} parent=67 // pred_check_branch
          %606 = sbr.rel (%p604) target = $region72
        $region71: #{tpu_custom_call.1} parent=67 // pred_region
          %p607 = scmp.lt.s32.totalorder %s32, 0
          %s608 = scalar_select %p607, %s32, 0
          %p609 = scmp.lt.s32.totalorder %s33, 1
          %s610 = scalar_select %p609, %s33, 1
          %s611 = smul.addr %s608, 2
          %s612 = sadd.s32 %s610, %s611
          %s613 = scalar_lea.vmem %s4, %s612
        $region72: #{tpu_custom_call.1} parent=67 // pred_fallthru
          _
      $region68: #{tpu_custom_call.1} parent=5 // pred_fallthru
        _
    $region6: #{tpu_custom_call.1} parent=1 // loop_footer
      %s23 = sadd.s32 1, %s19
    $region7: #{tpu_custom_call.1} parent=1 // loop_footer_branch
      %18 = sbr.rel target = $region3
    $region8: #{tpu_custom_call.1} parent=1 // loop_exit
      _
    %614 = vsyncpa [#allocation4], 1
    %s615 = scalar_lea.sflag [#allocation4], 1
    %616 = vsyncpa %s615, 1
    %617 = vsyncpa [#allocation6], 1
    %s618 = scalar_lea.sflag [#allocation6], 1
    %619 = vsyncpa %s618, 1
    %620 = vsyncpa [#allocation9], 1
    %s621 = scalar_lea.sflag [#allocation9], 1
    %622 = vsyncpa %s621, 1

</llo_original>
